<compile_context>
chip_gen: v6e
topology: v6e:2x2x1
jax: 0.10.0
libtpu: 0.0.40
codegen_flags: <defaults>
</compile_context>

<pallas_src>
import functools

import jax
import jax.numpy as jnp
from jax.experimental import pallas as pl
from jax.experimental.pallas import tpu as pltpu

_LANE = 128
_TILE_BYTES_TARGET = 2 << 20      # ~2 MiB per stream tile
_VMEM_LIMIT_BYTES = 32 << 20      # 3 streams x 2 buffers x 2 MiB + slack


def _mixup_kernel(batch_axis, perm_ref, coef_ref, gt_ref, gt_perm_ref, out_ref):
    # perm_ref : SMEM int32[B]   (scalar prefetch, consumed by the index_maps)
    # coef_ref : SMEM float32[B] (per-batch mixup coefficient)
    # gt_ref / gt_perm_ref / out_ref : VMEM tiles for batch i / perm[i] / i
    del perm_ref  # only used by the BlockSpec index_maps
    lam = coef_ref[pl.program_id(batch_axis)].astype(gt_ref.dtype)
    g = gt_ref[...]
    gp = gt_perm_ref[...]
    # gp + lam*(g - gp) == lam*g + (1-lam)*gp, with one fewer multiply.
    out_ref[...] = (gp + lam * (g - gp)).astype(out_ref.dtype)


def _pick_row_tile(rows, dtype, tile_bytes):
    """Row-tile size: full dim if it fits, else a dtype-aligned ~tile_bytes cap."""
    itemsize = jnp.dtype(dtype).itemsize
    sub = max(8, 32 // itemsize)  # sublane packing: 8 (f32) / 16 (bf16) / 32 (int8)
    cap = max(sub, (tile_bytes // (_LANE * itemsize)) // sub * sub)
    if rows <= cap:
        return rows               # block == full dim: always legal, no tail block
    return cap                    # multiple of `sub` (>= 8); cdiv grid + masked tail


def mixup_env_forward(gt, mixup_coefs, perm, *, tile_bytes=_TILE_BYTES_TARGET):
    """gt: (B, C, H, W); mixup_coefs: (B,) float32; perm: (B,) int32."""
    B, C, H, W = gt.shape
    F = C * H * W
    dtype = gt.dtype

    # Lane-dense view: (B, R, 128); pad the feature axis to a multiple of 128
    # only when necessary (cheap one-time XLA copy, avoids masked partial stores).
    gt_flat = gt.reshape(B, F)
    F_pad = pl.cdiv(F, _LANE) * _LANE
    if F_pad != F:
        gt_flat = jnp.pad(gt_flat, ((0, 0), (0, F_pad - F)))
    R = F_pad // _LANE
    gt_v = gt_flat.reshape(B, R, _LANE)

    tr = _pick_row_tile(R, dtype, tile_bytes)
    n_row_tiles = pl.cdiv(R, tr)
    blk = (1, tr, _LANE)

    # Put the larger grid axis first so megacore (v7x) shards the big axis.
    if n_row_tiles >= B:
        grid = (n_row_tiles, B)
        batch_axis = 1
        gt_map = lambda j, i, perm: (i, j, 0)
        gp_map = lambda j, i, perm: (perm[i], j, 0)
    else:
        grid = (B, n_row_tiles)
        batch_axis = 0
        gt_map = lambda i, j, perm: (i, j, 0)
        gp_map = lambda i, j, perm: (perm[i], j, 0)

    grid_spec = pltpu.PrefetchScalarGridSpec(
        num_scalar_prefetch=1,          # perm is prefetched into SMEM
        grid=grid,
        in_specs=[
            # per-batch coefficients, full array in SMEM
            pl.BlockSpec(memory_space=pltpu.MemorySpace.SMEM),
            # gt[i]
            pl.BlockSpec(blk, gt_map),
            # gt[perm[i]] — data-dependent block index via scalar prefetch
            pl.BlockSpec(blk, gp_map),
        ],
        out_specs=pl.BlockSpec(blk, gt_map),
    )

    out = pl.pallas_call(
        functools.partial(_mixup_kernel, batch_axis),
        out_shape=jax.ShapeDtypeStruct((B, R, _LANE), dtype),
        grid_spec=grid_spec,
        compiler_params=pltpu.CompilerParams(
            # every output block is independent (pure elementwise, no reduction)
            dimension_semantics=("parallel", "parallel"),
            vmem_limit_bytes=_VMEM_LIMIT_BYTES,
        ),
    )(perm, mixup_coefs, gt_v, gt_v)

    out = out.reshape(B, F_pad)
    if F_pad != F:
        out = out[:, :F]
    return out.reshape(B, C, H, W)


def mixup_env_reference(gt, mixup_coefs, perm):
    lam = mixup_coefs.reshape(-1, 1, 1, 1).astype(gt.dtype)
    return lam * gt + (1.0 - lam) * gt[perm]


def _run_case(key, shape, **kwargs):
    B = shape[0]
    k_gt, k_coef, k_perm = jax.random.split(key, 3)
    gt = jax.random.normal(k_gt, shape, dtype=jnp.float32)
    beta = 1.0  # MixupEnv(beta=1.0)
    # Deterministic stand-ins for np.random.beta / np.random.permutation
    coefs = jax.random.beta(k_coef, beta, beta, shape=(B,)).astype(jnp.float32)
    perm = jax.random.permutation(k_perm, B).astype(jnp.int32)

    out = jax.block_until_ready(mixup_env_forward(gt, coefs, perm, **kwargs))
    ref = mixup_env_reference(gt, coefs, perm)
    assert out.shape == shape
    assert jnp.allclose(out, ref, atol=1e-5, rtol=1e-5)


if __name__ == "__main__":
    key = jax.random.PRNGKey(0)
    k1, k2, k3 = jax.random.split(key, 3)

    # 1) Main case: F % 128 == 0, no pad, no tail blocks.
    _run_case(k1, (2, 4, 16, 16))
    # 2) F % 128 != 0: exercises the pad-to-128 path (R == 1, full-dim block).
    _run_case(k2, (3, 3, 5, 7))
    # 3) Forced tiny tile so R % tr != 0: exercises cdiv grid + masked tail block
    #    and the (row-tiles, batch) grid ordering.
    _run_case(k3, (2, 4, 16, 48), tile_bytes=16 * _LANE * 4)

    print("KERNEL_OK")
</pallas_src>

<mosaic_0001>
module attributes {stable_mosaic.version = 11 : i64} {
  func.func @_mixup_kernel(%arg0: i32, %arg1: i32, %arg2: memref<2xi32, #tpu.memory_space<smem>>, %arg3: memref<2xf32, #tpu.memory_space<smem>>, %arg4: memref<1x8x128xf32, #tpu.memory_space<vmem>>, %arg5: memref<1x8x128xf32, #tpu.memory_space<vmem>>, %arg6: memref<1x8x128xf32, #tpu.memory_space<vmem>>) attributes {dimension_semantics = [#tpu.dimension_semantics<parallel>, #tpu.dimension_semantics<parallel>], iteration_bounds = array<i64: 2, 1>, scalar_prefetch = 1 : i64, scratch_operands = 0 : i64, tpu.core_type = #tpu.core_type<tc>, window_params = [{transform_indices = @transform_0, window_bounds = array<i64: 2>}, {transform_indices = @transform_1, window_bounds = array<i64: 1, 8, 128>}, {transform_indices = @transform_2, window_bounds = array<i64: 1, 8, 128>}, {transform_indices = @transform_3, window_bounds = array<i64: 1, 8, 128>}]} {
    %0 = arith.index_cast %arg0 : i32 to index
    %1 = memref.load %arg3[%0] : memref<2xf32, #tpu.memory_space<smem>>
    %c0 = arith.constant 0 : index
    %c0_0 = arith.constant 0 : index
    %c0_1 = arith.constant 0 : index
    %2 = vector.load %arg4[%c0, %c0_0, %c0_1] : memref<1x8x128xf32, #tpu.memory_space<vmem>>, vector<1x8x128xf32>
    %c0_2 = arith.constant 0 : index
    %c0_3 = arith.constant 0 : index
    %c0_4 = arith.constant 0 : index
    %3 = vector.load %arg5[%c0_2, %c0_3, %c0_4] : memref<1x8x128xf32, #tpu.memory_space<vmem>>, vector<1x8x128xf32>
    %4 = arith.subf %2, %3 : vector<1x8x128xf32>
    %5 = vector.broadcast %1 : f32 to vector<1x8x128xf32>
    %6 = arith.mulf %5, %4 : vector<1x8x128xf32>
    %7 = arith.addf %3, %6 : vector<1x8x128xf32>
    %c0_5 = arith.constant 0 : index
    %c0_6 = arith.constant 0 : index
    %c0_7 = arith.constant 0 : index
    %8 = vector.load %arg6[%c0_5, %c0_6, %c0_7] : memref<1x8x128xf32, #tpu.memory_space<vmem>>, vector<1x8x128xf32>
    tpu.vector_store %arg6[%c0_5, %c0_6, %c0_7], %7 {strides = array<i32>} : memref<1x8x128xf32, #tpu.memory_space<vmem>>, vector<1x8x128xf32>,
    return
  }
  func.func @transform_0(%arg0: i32, %arg1: i32, %arg2: memref<2xi32, #tpu.memory_space<smem>>) -> i32 {
    %c0_i32 = arith.constant 0 : i32
    %c0_i32_0 = arith.constant 0 : i32
    return %c0_i32 : i32
  }
  func.func @transform_1(%arg0: i32, %arg1: i32, %arg2: memref<2xi32, #tpu.memory_space<smem>>) -> (i32, i32, i32) {
    %c0_i32 = arith.constant 0 : i32
    %c0_i32_0 = arith.constant 0 : i32
    return %arg0, %arg1, %c0_i32 : i32, i32, i32
  }
  func.func @transform_2(%arg0: i32, %arg1: i32, %arg2: memref<2xi32, #tpu.memory_space<smem>>) -> (i32, i32, i32) {
    %0 = arith.index_cast %arg0 : i32 to index
    %1 = memref.load %arg2[%0] : memref<2xi32, #tpu.memory_space<smem>>
    %c0_i32 = arith.constant 0 : i32
    %c0_i32_0 = arith.constant 0 : i32
    return %1, %arg1, %c0_i32 : i32, i32, i32
  }
  func.func @transform_3(%arg0: i32, %arg1: i32, %arg2: memref<2xi32, #tpu.memory_space<smem>>) -> (i32, i32, i32) {
    %c0_i32 = arith.constant 0 : i32
    %c0_i32_0 = arith.constant 0 : i32
    return %arg0, %arg1, %c0_i32 : i32, i32, i32
  }
}

</mosaic_0001>

<llo_original>
// kernel: tpu_custom_call.1
$region0: #{tpu_custom_call.1}
  #allocation0 [shape = 'u32[]', space=smem, size = 0x4, offset = 0x4, fixed_abs, tag = 'smem constant byte address 0x4 - core index']
  #allocation1 [shape = 'u32[144,128]{1,0:T(1,128)}', space=vmem, size = 0x12000, scoped, tag = 'internal scratch']
  #allocation2 [shape = 's32[1]{0}', space=sflag, size = 0x4, scoped, tag = 'scoped memory for tpu_custom_call.1']
  #allocation3 [shape = 'u8[512]{0}', space=smem, size = 0x200, scoped, tag = 'prefetched SMEM operand 0']
  %s0 = inlined_call_operand.hbm [shape: s32[2], index: 0, kind: input, shape index: {}]
  %s1 = inlined_call_operand.vmem [shape: f32[2], index: 1, kind: input, shape index: {}]
  %s2 = inlined_call_operand.hbm [shape: f32[2,8,128], index: 2, kind: input, shape index: {}]
  %s3 = inlined_call_operand.hbm [shape: f32[2,8,128], index: 3, kind: input, shape index: {}]
  %s4 = inlined_call_operand.hbm [shape: f32[2,8,128], index: 4, kind: output, shape index: {}]
  %s5 = sld [smem:[#allocation0]]
  $region57: #{tpu_custom_call.1} parent=0
    _
  %s7 = ssub.s32 1, %s5
  %s8 = scalar_select 0, %s7, %s5
  %10 = dma.hbm_to_smem %s0, 16, [#allocation3], [#allocation2]
  %11 = dma.done [#allocation2], 16
  %12 = sfence
  $region1: #{tpu_custom_call.1} parent=0
    #allocation4 [shape = 'u8[512]{0}', space=smem, size = 0x200, scoped, tag = 'input window, operand 1, single buffered']
    #allocation5 [shape = 's32[2]{0}', space=sflag, size = 0x8, scoped, tag = 'scoped memory for tpu_custom_call.1']
    #allocation6 [shape = 's32[2]{0}', space=sflag, size = 0x8, scoped, tag = 'scoped memory for tpu_custom_call.1']
    #allocation7 [shape = 's32[2]{0}', space=sflag, size = 0x8, scoped, tag = 'scoped memory for tpu_custom_call.1']
    #allocation8 [shape = 'u8[8192]{0}', space=vmem, size = 0x2000, scoped, tag = 'input window, operand 2']
    #allocation9 [shape = 'u8[8192]{0}', space=vmem, size = 0x2000, scoped, tag = 'input window, operand 3']
    #allocation10 [shape = 's32[2]{0}', space=sflag, size = 0x8, scoped, tag = 'scoped memory for tpu_custom_call.1']
    #allocation11 [shape = 'u8[8192]{0}', space=vmem, size = 0x2000, scoped, tag = 'output window, operand 0']
    %13 = vsyncpa [#allocation7], 0
    %14 = vsyncpa [#allocation5], 0
    %s15 = scalar_lea.sflag [#allocation5], 1
    %16 = vsyncpa %s15, 0
    %17 = vsyncpa [#allocation10], 0
    %s18 = scalar_lea.sflag [#allocation10], 1
    %19 = vsyncpa %s18, 0
    %20 = vsyncpa [#allocation6], 0
    %s21 = scalar_lea.sflag [#allocation6], 1
    %22 = vsyncpa %s21, 0
    loop: start=0, step=1, limit=4
    $region2: #{tpu_custom_call.1} parent=1 // loop_pre_header
      _
    $region3: #{tpu_custom_call.1} parent=1 // loop_header
      %s24 = sphi 0, %s28
      %p25 = scmp.ge.s32.totalorder %s24, 4
      %s31 = sphi 0, %s43
      %s32 = sphi 0, %s39
      %s33 = sphi 0, %s31
      %s34 = sphi 0, %s32
      %s35 = sphi 0, %s33
      %s36 = sphi 0, %s34
      %s44 = sphi 0, %s44
      %s46 = sphi 0, %s44
      %s47 = sphi 0, %s46
      %s61 = sphi 0, %s47
      %s69 = sphi 0, %s71
      %s72 = sphi 0, %s69
      %s73 = sphi 0, %s72
      %s89 = sphi 0, %s73
      %s99 = sphi 0, %s101
      %s102 = sphi 0, %s99
      %s103 = sphi 0, %s102
      %s119 = sphi 0, %s103
      %s127 = sphi 0, %s129
      %s130 = sphi 0, %s127
      %s131 = sphi 0, %s130
      %s147 = sphi 0, %s131
    $region4: #{tpu_custom_call.1} parent=1 // loop_header_branch
      %27 = sbr.rel (%p25) target = $region8
    $region5: #{tpu_custom_call.1} parent=1 // loop_body
      %s29 = ssub.s32 %s24, 1
      %s30 = ssub.s32 %s24, 2
      %s37 = sadd.s32 1, %s32
      %p38 = scmp.ge.s32.totalorder %s37, 1
      %s39 = scalar_select %p38, 0, %s37
      %s40 = sadd.s32 1, %s31
      %s41 = scalar_select %p38, %s40, %s31
      %p42 = scmp.ge.s32.totalorder %s41, 2
      %s43 = scalar_select %p42, 0, %s41
      %s45 = sadd.s32 %s44, 1
      %p48 = scmp.eq.s32.totalorder %s24, 1
      %p49 = scmp.ne.s32.totalorder %s44, %s46
      %p50 = scmp.eq.s32.totalorder %s24, 0
      %p51 = por %p49, %p50
      %p52 = scmp.ne.s32.totalorder %s44, %s46
      %p53 = scmp.eq.s32.totalorder %s29, 1
      %p54 = por %p52, %p53
      %p55 = scmp.ne.s32.totalorder %s46, %s47
      %p56 = scmp.eq.s32.totalorder %s29, 0
      %p57 = por %p55, %p56
      %p58 = scmp.ne.s32.totalorder %s46, %s47
      %p59 = scmp.eq.s32.totalorder %s30, 1
      %p60 = por %p58, %p59
      %p62 = scmp.ne.s32.totalorder %s47, %s61
      %p63 = scmp.eq.s32.totalorder %s30, 0
      %p64 = por %p62, %p63
      %s65 = ssub.s32 %s31, %s43
      %s66 = ssub.s32 %s32, %s39
      %s67 = sor.u32 %s65, %s66
      %p68 = scmp.eq.s32.totalorder %s67, 0
      %s70 = sadd.s32 %s69, 1
      %s71 = scalar_select %p68, %s69, %s70
      %p74 = pneg %p68
      %p75 = scmp.eq.s32.totalorder %s24, 1
      %p76 = por %p74, %p75
      %p77 = scmp.ne.s32.totalorder %s69, %s72
      %p78 = scmp.eq.s32.totalorder %s24, 0
      %p79 = por %p77, %p78
      %p80 = scmp.ne.s32.totalorder %s69, %s72
      %p81 = scmp.eq.s32.totalorder %s29, 1
      %p82 = por %p80, %p81
      %p83 = scmp.ne.s32.totalorder %s72, %s73
      %p84 = scmp.eq.s32.totalorder %s29, 0
      %p85 = por %p83, %p84
      %p86 = scmp.ne.s32.totalorder %s72, %s73
      %p87 = scmp.eq.s32.totalorder %s30, 1
      %p88 = por %p86, %p87
      %p90 = scmp.ne.s32.totalorder %s73, %s89
      %p91 = scmp.eq.s32.totalorder %s30, 0
      %p92 = por %p90, %p91
      %s93 = sld [smem:[#allocation3 + %s31]]
      %s94 = sld [smem:[#allocation3 + %s43]]
      %s95 = ssub.s32 %s93, %s94
      %s96 = ssub.s32 %s32, %s39
      %s97 = sor.u32 %s95, %s96
      %p98 = scmp.eq.s32.totalorder %s97, 0
      %s100 = sadd.s32 %s99, 1
      %s101 = scalar_select %p98, %s99, %s100
      %p104 = pneg %p98
      %p105 = scmp.eq.s32.totalorder %s24, 1
      %p106 = por %p104, %p105
      %p107 = scmp.ne.s32.totalorder %s99, %s102
      %p108 = scmp.eq.s32.totalorder %s24, 0
      %p109 = por %p107, %p108
      %p110 = scmp.ne.s32.totalorder %s99, %s102
      %p111 = scmp.eq.s32.totalorder %s29, 1
      %p112 = por %p110, %p111
      %p113 = scmp.ne.s32.totalorder %s102, %s103
      %p114 = scmp.eq.s32.totalorder %s29, 0
      %p115 = por %p113, %p114
      %p116 = scmp.ne.s32.totalorder %s102, %s103
      %p117 = scmp.eq.s32.totalorder %s30, 1
      %p118 = por %p116, %p117
      %p120 = scmp.ne.s32.totalorder %s103, %s119
      %p121 = scmp.eq.s32.totalorder %s30, 0
      %p122 = por %p120, %p121
      %s123 = ssub.s32 %s31, %s43
      %s124 = ssub.s32 %s32, %s39
      %s125 = sor.u32 %s123, %s124
      %p126 = scmp.eq.s32.totalorder %s125, 0
      %s128 = sadd.s32 %s127, 1
      %s129 = scalar_select %p126, %s127, %s128
      %p132 = pneg %p126
      %p133 = scmp.eq.s32.totalorder %s24, 1
      %p134 = por %p132, %p133
      %p135 = scmp.ne.s32.totalorder %s127, %s130
      %p136 = scmp.eq.s32.totalorder %s24, 0
      %p137 = por %p135, %p136
      %p138 = scmp.ne.s32.totalorder %s127, %s130
      %p139 = scmp.eq.s32.totalorder %s29, 1
      %p140 = por %p138, %p139
      %p141 = scmp.ne.s32.totalorder %s130, %s131
      %p142 = scmp.eq.s32.totalorder %s29, 0
      %p143 = por %p141, %p142
      %p144 = scmp.ne.s32.totalorder %s130, %s131
      %p145 = scmp.eq.s32.totalorder %s30, 1
      %p146 = por %p144, %p145
      %p148 = scmp.ne.s32.totalorder %s131, %s147
      %p149 = scmp.eq.s32.totalorder %s30, 0
      %p150 = por %p148, %p149
      %p151 = scmp.le.s32.totalorder 1, %s24
      %p152 = scmp.lt.s32.totalorder %s24, 3
      %p153 = pnand %p151, %p152
      %p154 = pneg %p153
      // Predicated region
      $region9: #{tpu_custom_call.1} parent=5 // pred_check
        _
      $region10: #{tpu_custom_call.1} parent=5 // pred_check_branch
        %156 = sbr.rel (%p153) target = $region12
      $region11: #{tpu_custom_call.1} parent=5 // pred_region
        %s157 = ssub.s32 %s24, 1
        // Predicated region
        $region13: #{tpu_custom_call.1} parent=11 // pred_check
          %p158 = pneg %p57
        $region14: #{tpu_custom_call.1} parent=11 // pred_check_branch
          %160 = sbr.rel (%p158) target = $region16
        $region15: #{tpu_custom_call.1} parent=11 // pred_region
          %s162 = ssub.s32 16, 16
          %163 = vsyncadd [#allocation7], %s162
          %s165 = sshll.u32 %s1, 4
          %s166 = int_to_ptr.vmem [resolvable:$true] %s165
          %168 = dma.vmem_to_smem %s166, 16, [#allocation4], [#allocation7]
        $region16: #{tpu_custom_call.1} parent=11 // pred_fallthru
          _
      $region12: #{tpu_custom_call.1} parent=5 // pred_fallthru
        _
      %p169 = scmp.lt.s32.totalorder %s24, 2
      // Predicated region
      $region17: #{tpu_custom_call.1} parent=5 // pred_check
        %p170 = pneg %p169
      $region18: #{tpu_custom_call.1} parent=5 // pred_check_branch
        %172 = sbr.rel (%p170) target = $region20
      $region19: #{tpu_custom_call.1} parent=5 // pred_region
        // Predicated region
        $region21: #{tpu_custom_call.1} parent=19 // pred_check
          %p173 = pneg %p79
        $region22: #{tpu_custom_call.1} parent=19 // pred_check_branch
          %175 = sbr.rel (%p173) target = $region24
        $region23: #{tpu_custom_call.1} parent=19 // pred_region
          %s176 = sand.u32 %s69, 1
          %s177 = scalar_lea.sflag [#allocation5], %s176
          %s178 = sand.u32 %s69, 1
          %s179 = smul.addr %s178, 8
          %s180 = scalar_lea.vmem [#allocation8], %s179
          %s182 = ssub.s32 128, 128
          %183 = vsyncadd %s177, %s182
          %s184 = sadd.s32 %s32, %s31
          %s185 = smul.addr %s184, 128
          %s186 = scalar_lea.hbm %s2, %s185
          %s188 = sshll.u32 %s180, 4
          %s189 = int_to_ptr.vmem [resolvable:$true] %s188
          %191 = dma.hbm_to_vmem [thread:$0]  %s186, 128, %s189, %s177
        $region24: #{tpu_custom_call.1} parent=19 // pred_fallthru
          _
        // Predicated region
        $region25: #{tpu_custom_call.1} parent=19 // pred_check
          %p192 = pneg %p109
        $region26: #{tpu_custom_call.1} parent=19 // pred_check_branch
          %194 = sbr.rel (%p192) target = $region28
        $region27: #{tpu_custom_call.1} parent=19 // pred_region
          %s195 = sand.u32 %s99, 1
          %s196 = scalar_lea.sflag [#allocation10], %s195
          %s197 = sand.u32 %s99, 1
          %s198 = smul.addr %s197, 8
          %s199 = scalar_lea.vmem [#allocation9], %s198
          %s200 = sld [smem:[#allocation3 + %s31]]
          %s202 = ssub.s32 128, 128
          %203 = vsyncadd %s196, %s202
          %s204 = sadd.s32 %s32, %s200
          %s205 = smul.addr %s204, 128
          %s206 = scalar_lea.hbm %s3, %s205
          %s208 = sshll.u32 %s199, 4
          %s209 = int_to_ptr.vmem [resolvable:$true] %s208
          %211 = dma.hbm_to_vmem [thread:$0]  %s206, 128, %s209, %s196
        $region28: #{tpu_custom_call.1} parent=19 // pred_fallthru
          _
      $region20: #{tpu_custom_call.1} parent=5 // pred_fallthru
        _
      %p212 = scmp.le.s32.totalorder 1, %s24
      %p213 = scmp.lt.s32.totalorder %s24, 3
      %p214 = pnand %p212, %p213
      %p215 = pneg %p214
      // Predicated region
      $region29: #{tpu_custom_call.1} parent=5 // pred_check
        _
      $region30: #{tpu_custom_call.1} parent=5 // pred_check_branch
        %217 = sbr.rel (%p214) target = $region32
      $region31: #{tpu_custom_call.1} parent=5 // pred_region
        %s218 = ssub.s32 %s24, 1
        // Predicated region
        $region33: #{tpu_custom_call.1} parent=31 // pred_check
          %p219 = pneg %p57
        $region34: #{tpu_custom_call.1} parent=31 // pred_check_branch
          %221 = sbr.rel (%p219) target = $region36
        $region35: #{tpu_custom_call.1} parent=31 // pred_region
          %222 = dma.done [#allocation7], 16
        $region36: #{tpu_custom_call.1} parent=31 // pred_fallthru
          _
        %s223 = sand.u32 %s72, 1
        %s224 = scalar_lea.sflag [#allocation5], %s223
        %s225 = sand.u32 %s72, 1
        %s226 = smul.addr %s225, 8
        %s227 = scalar_lea.vmem [#allocation8], %s226
        // Predicated region
        $region37: #{tpu_custom_call.1} parent=31 // pred_check
          %p228 = pneg %p85
        $region38: #{tpu_custom_call.1} parent=31 // pred_check_branch
          %230 = sbr.rel (%p228) target = $region40
        $region39: #{tpu_custom_call.1} parent=31 // pred_region
          %231 = dma.done %s224, 128
        $region40: #{tpu_custom_call.1} parent=31 // pred_fallthru
          _
        %s232 = sand.u32 %s102, 1
        %s233 = scalar_lea.sflag [#allocation10], %s232
        %s234 = sand.u32 %s102, 1
        %s235 = smul.addr %s234, 8
        %s236 = scalar_lea.vmem [#allocation9], %s235
        // Predicated region
        $region41: #{tpu_custom_call.1} parent=31 // pred_check
          %p237 = pneg %p115
        $region42: #{tpu_custom_call.1} parent=31 // pred_check_branch
          %239 = sbr.rel (%p237) target = $region44
        $region43: #{tpu_custom_call.1} parent=31 // pred_region
          %240 = dma.done %s233, 128
        $region44: #{tpu_custom_call.1} parent=31 // pred_fallthru
          _
        %241 = sfence
        %p242 = pneg %p57
        %p243 = pneg %p54
        %s244 = sand.u32 %s72, 1
        %s245 = scalar_lea.sflag [#allocation5], %s244
        %s246 = sand.u32 %s72, 1
        %s247 = smul.addr %s246, 8
        %s248 = scalar_lea.vmem [#allocation8], %s247
        %p249 = pneg %p85
        %p250 = pneg %p82
        %s251 = sand.u32 %s102, 1
        %s252 = scalar_lea.sflag [#allocation10], %s251
        %s253 = sand.u32 %s102, 1
        %s254 = smul.addr %s253, 8
        %s255 = scalar_lea.vmem [#allocation9], %s254
        %p256 = pneg %p115
        %p257 = pneg %p112
        %p258 = pneg %p143
        %p259 = pneg %p140
        %s260 = sand.u32 %s130, 1
        %s261 = scalar_lea.sflag [#allocation6], %s260
        %s262 = sand.u32 %s130, 1
        %s263 = smul.addr %s262, 8
        %s264 = scalar_lea.vmem [#allocation11], %s263
        %s265 = sld [smem:[#allocation3 + %s33]]
        %s266 = sld [smem:[#allocation4 + %s33]]
        %v267 = vld [vmem:[%s227] sm:$0xff]
        %v268 = vld [vmem:[%s236] sm:$0xff]
        %v269 = vsub.f32 %v267, %v268
        %v270 = vstv %s266
        %v271 = vmul.f32 %v270, %v269
        %v272 = vadd.f32 %v268, %v271
        %273 = vst [vmem:[%s264] sm:$0xff] %v272
        %s274 = sand.u32 %s130, 1
        %s275 = scalar_lea.sflag [#allocation6], %s274
        %s276 = sand.u32 %s130, 1
        %s277 = smul.addr %s276, 8
        %s278 = scalar_lea.vmem [#allocation11], %s277
        // Predicated region
        $region45: #{tpu_custom_call.1} parent=31 // pred_check
          %p279 = pneg %p140
        $region46: #{tpu_custom_call.1} parent=31 // pred_check_branch
          %281 = sbr.rel (%p279) target = $region48
        $region47: #{tpu_custom_call.1} parent=31 // pred_region
          %s283 = ssub.s32 128, 128
          %284 = vsyncadd %s275, %s283
          %s285 = sadd.s32 %s34, %s33
          %s286 = smul.addr %s285, 128
          %s287 = scalar_lea.hbm %s4, %s286
          %s289 = sshll.u32 %s278, 4
          %s290 = int_to_ptr.vmem [resolvable:$true] %s289
          %292 = dma.vmem_to_hbm [thread:$0]  %s290, 128, %s287, %s275
        $region48: #{tpu_custom_call.1} parent=31 // pred_fallthru
          _
      $region32: #{tpu_custom_call.1} parent=5 // pred_fallthru
        _
      %p293 = scmp.le.s32.totalorder 2, %s24
      // Predicated region
      $region49: #{tpu_custom_call.1} parent=5 // pred_check
        %p294 = pneg %p293
      $region50: #{tpu_custom_call.1} parent=5 // pred_check_branch
        %296 = sbr.rel (%p294) target = $region52
      $region51: #{tpu_custom_call.1} parent=5 // pred_region
        %s297 = ssub.s32 %s24, 2
        // Predicated region
        $region53: #{tpu_custom_call.1} parent=51 // pred_check
          %p298 = pneg %p146
        $region54: #{tpu_custom_call.1} parent=51 // pred_check_branch
          %300 = sbr.rel (%p298) target = $region56
        $region55: #{tpu_custom_call.1} parent=51 // pred_region
          %s301 = sand.u32 %s131, 1
          %s302 = scalar_lea.sflag [#allocation6], %s301
          %s303 = sand.u32 %s131, 1
          %s304 = smul.addr %s303, 8
          %s305 = scalar_lea.vmem [#allocation11], %s304
          %306 = dma.done %s302, 128
        $region56: #{tpu_custom_call.1} parent=51 // pred_fallthru
          _
      $region52: #{tpu_custom_call.1} parent=5 // pred_fallthru
        _
    $region6: #{tpu_custom_call.1} parent=1 // loop_footer
      %s28 = sadd.s32 1, %s24
    $region7: #{tpu_custom_call.1} parent=1 // loop_footer_branch
      %23 = sbr.rel target = $region3
    $region8: #{tpu_custom_call.1} parent=1 // loop_exit
      _
    %307 = vsyncpa [#allocation5], 1
    %s308 = scalar_lea.sflag [#allocation5], 1
    %309 = vsyncpa %s308, 1
    %310 = vsyncpa [#allocation10], 1
    %s311 = scalar_lea.sflag [#allocation10], 1
    %312 = vsyncpa %s311, 1
    %313 = vsyncpa [#allocation6], 1
    %s314 = scalar_lea.sflag [#allocation6], 1
    %315 = vsyncpa %s314, 1
    %316 = vsyncpa [#allocation7], 1
    %s317 = scalar_lea.sflag [#allocation7], 1
    %318 = vsyncpa %s317, 1

</llo_original>
